<compile_context>
chip_gen: v6e
topology: v6e:2x2x1
jax: 0.10.0
libtpu: 0.0.40
codegen_flags: <defaults>
</compile_context>

<pallas_src>
import jax
import jax.numpy as jnp
from jax.experimental import pallas as pl
from jax.experimental.pallas import tpu as pltpu

P = 128          # lane width / padded feature size
N_LAYERS = 7     # slab layout: [ e1 | e2 | mu | lv | d1 | d2 | d3 ], each 128 columns wide


def _vae_kernel(in_ref, w_ref, b_ref, out_ref):
    xs = in_ref[:, 0:P]          # zero-padded x    [BM, 128]
    eps = in_ref[:, P:2 * P]     # zero-padded eps  [BM, 128] (real noise in first latent_dim cols)

    def layer(a, idx, relu):
        w = w_ref[:, idx * P:(idx + 1) * P]      # static, lane-aligned [128, 128] view
        b = b_ref[:, idx * P:(idx + 1) * P]      # [1, 128], broadcast over rows
        y = jnp.dot(a, w, preferred_element_type=jnp.float32) + b
        return jnp.maximum(y, 0.0) if relu else y

    # ---- encoder: Linear(input,7)+ReLU, Linear(7,2)+ReLU (all padded to 128) ----
    h = layer(xs, 0, True)
    h = layer(h, 1, True)

    # ---- fused mu / logvar heads: one [128, 256] MXU dot, split at a 128-lane boundary ----
    wml = w_ref[:, 2 * P:4 * P]
    bml = b_ref[:, 2 * P:4 * P]
    ml = jnp.dot(h, wml, preferred_element_type=jnp.float32) + bml
    mu = ml[:, 0:P]
    logvar = ml[:, P:2 * P]

    # ---- reparameterize: z = mu + eps * exp(0.5 * logvar) ----
    # Padded logvar lanes are exactly 0 -> exp = 1, but eps is 0 there, so z stays zero-padded.
    z = mu + eps * jnp.exp(0.5 * logvar)

    # ---- decoder: Linear(latent,2)+ReLU, Linear(2,7)+ReLU, Linear(7,input) ----
    d = layer(z, 4, True)
    d = layer(d, 5, True)
    recon = layer(d, 6, False)

    # Single lane-dense output slab: [ recon | mu | logvar ].
    out_ref[:, 0:P] = recon
    out_ref[:, P:2 * P] = mu
    out_ref[:, 2 * P:3 * P] = logvar


def _round_up(n, m):
    return ((n + m - 1) // m) * m


def vae_forward(x, w_slab, b_slab, eps, *, block_b=512):
    """Full VAE forward in one Pallas kernel.

    x:      [B, input_dim] f32
    eps:    [B, latent_dim] f32 standard-normal noise (reparameterization)
    w_slab: [128, 7*128] packed, zero-padded weights (see pack_params)
    b_slab: [1, 7*128]   packed, zero-padded biases
    Returns (recon [B, input_dim], mu [B, latent_dim], logvar [B, latent_dim]).
    """
    B, input_dim = x.shape
    latent_dim = eps.shape[1]

    # Batch tile: big pipelined blocks for real batches, sublane-aligned for tiny ones.
    BM = block_b if B >= block_b else _round_up(B, 8)
    B_pad = _round_up(B, BM)

    # Lane-dense input slab: [B_pad, 256] = [ x padded to 128 | eps padded to 128 ].
    # Padded x columns are harmless (matching weight rows are zero); padded batch rows produce
    # garbage-free zeros and are sliced off below.
    x_pad = jnp.pad(x.astype(jnp.float32), ((0, B_pad - B), (0, P - input_dim)))
    e_pad = jnp.pad(eps.astype(jnp.float32), ((0, B_pad - B), (0, P - latent_dim)))
    in_slab = jnp.concatenate([x_pad, e_pad], axis=1)

    out = pl.pallas_call(
        _vae_kernel,
        out_shape=jax.ShapeDtypeStruct((B_pad, 3 * P), jnp.float32),
        grid=(B_pad // BM,),
        in_specs=[
            pl.BlockSpec((BM, 2 * P), lambda i: (i, 0)),         # x|eps, streamed per batch block
            pl.BlockSpec((P, N_LAYERS * P), lambda i: (0, 0)),   # weights, VMEM-resident
            pl.BlockSpec((1, N_LAYERS * P), lambda i: (0, 0)),   # biases,  VMEM-resident
        ],
        out_specs=pl.BlockSpec((BM, 3 * P), lambda i: (i, 0)),   # recon|mu|logvar slab
        compiler_params=pltpu.CompilerParams(
            dimension_semantics=("parallel",),   # shards grid steps across both v7x TCs
        ),
    )(in_slab, w_slab, b_slab)

    recon = out[:B, :input_dim]
    mu = out[:B, P:P + latent_dim]
    logvar = out[:B, 2 * P:2 * P + latent_dim]
    return recon, mu, logvar


def init_params(key, input_dim, latent_dim):
    """Deterministic synthetic init. Weights are [in, out]; biases are [1, out]
    (equivalent to PyTorch Linear with W = W_pt.T)."""
    dims = {
        "e1": (input_dim, 7),
        "e2": (7, 2),
        "mu": (2, latent_dim),
        "lv": (2, latent_dim),
        "d1": (latent_dim, 2),
        "d2": (2, 7),
        "d3": (7, input_dim),
    }
    params = {}
    for name, (fan_in, fan_out) in dims.items():
        key, kw, kb = jax.random.split(key, 3)
        bound = 1.0 / jnp.sqrt(jnp.float32(fan_in))
        params[f"w_{name}"] = jax.random.uniform(
            kw, (fan_in, fan_out), jnp.float32, -bound, bound)
        params[f"b_{name}"] = jax.random.uniform(
            kb, (1, fan_out), jnp.float32, -bound, bound)
    return params


def pack_params(params):
    """Pack all layers into two zero-padded, lane-dense slabs (done once, outside the kernel)."""
    layer_order = ["e1", "e2", "mu", "lv", "d1", "d2", "d3"]
    w_slab = jnp.zeros((P, N_LAYERS * P), jnp.float32)
    b_slab = jnp.zeros((1, N_LAYERS * P), jnp.float32)
    for i, name in enumerate(layer_order):
        w = params[f"w_{name}"]
        b = params[f"b_{name}"]
        fan_in, fan_out = w.shape
        w_slab = w_slab.at[:fan_in, i * P:i * P + fan_out].set(w)
        b_slab = b_slab.at[:, i * P:i * P + fan_out].set(b)
    return w_slab, b_slab


def vae_reference(x, params, eps):
    """Pure-JAX reference of the same forward pass (for a sanity check)."""
    relu = lambda a: jnp.maximum(a, 0.0)
    h = relu(x @ params["w_e1"] + params["b_e1"])
    h = relu(h @ params["w_e2"] + params["b_e2"])
    mu = h @ params["w_mu"] + params["b_mu"]
    logvar = h @ params["w_lv"] + params["b_lv"]
    z = mu + eps * jnp.exp(0.5 * logvar)
    d = relu(z @ params["w_d1"] + params["b_d1"])
    d = relu(d @ params["w_d2"] + params["b_d2"])
    recon = d @ params["w_d3"] + params["b_d3"]
    return recon, mu, logvar


if __name__ == "__main__":
    # Small shapes consistent with the module: data[:, :-11] -> pick input_dim=16, latent_dim=2.
    B, INPUT_DIM, LATENT_DIM = 8, 16, 2

    root = jax.random.PRNGKey(0)
    k_param, k_x, k_eps = jax.random.split(root, 3)

    params = init_params(k_param, INPUT_DIM, LATENT_DIM)
    x = jax.random.normal(k_x, (B, INPUT_DIM), jnp.float32)
    # torch.randn_like(std) noise, sampled deterministically outside the kernel and folded
    # into the input slab so the result is reproducible and testable.
    # TODO(synk): could instead generate eps in-kernel via pltpu.prng_seed/stateful_normal.
    eps = jax.random.normal(k_eps, (B, LATENT_DIM), jnp.float32)

    w_slab, b_slab = pack_params(params)   # packed/padded once

    fwd = jax.jit(vae_forward)
    recon, mu, logvar = jax.block_until_ready(fwd(x, w_slab, b_slab, eps))

    # Correctness check vs. pure-JAX reference.
    r_ref, mu_ref, lv_ref = vae_reference(x, params, eps)
    assert recon.shape == (B, INPUT_DIM)
    assert mu.shape == (B, LATENT_DIM) and logvar.shape == (B, LATENT_DIM)
    assert jnp.allclose(recon, r_ref, atol=1e-5, rtol=1e-5)
    assert jnp.allclose(mu, mu_ref, atol=1e-5, rtol=1e-5)
    assert jnp.allclose(logvar, lv_ref, atol=1e-5, rtol=1e-5)

    print("KERNEL_OK")
</pallas_src>

<mosaic_0001>
module attributes {stable_mosaic.version = 11 : i64} {
  func.func @_vae_kernel(%arg0: i32, %arg1: memref<8x256xf32, #tpu.memory_space<vmem>>, %arg2: memref<128x896xf32, #tpu.memory_space<vmem>>, %arg3: memref<1x896xf32, #tpu.memory_space<vmem>>, %arg4: memref<8x384xf32, #tpu.memory_space<vmem>>) attributes {dimension_semantics = [#tpu.dimension_semantics<parallel>], iteration_bounds = array<i64: 1>, scalar_prefetch = 0 : i64, scratch_operands = 0 : i64, tpu.core_type = #tpu.core_type<tc>, window_params = [{transform_indices = @transform_0, window_bounds = array<i64: 8, 256>}, {pipeline_mode = #tpu.pipeline_mode<synchronous>, transform_indices = @transform_1, window_bounds = array<i64: 128, 896>}, {pipeline_mode = #tpu.pipeline_mode<synchronous>, transform_indices = @transform_2, window_bounds = array<i64: 1, 896>}, {transform_indices = @transform_3, window_bounds = array<i64: 8, 384>}]} {
    %c0 = arith.constant 0 : index
    %c0_0 = arith.constant 0 : index
    %0 = vector.load %arg1[%c0, %c0_0] : memref<8x256xf32, #tpu.memory_space<vmem>>, vector<8x128xf32>
    %c0_1 = arith.constant 0 : index
    %c128 = arith.constant 128 : index
    %1 = vector.load %arg1[%c0_1, %c128] : memref<8x256xf32, #tpu.memory_space<vmem>>, vector<8x128xf32>
    %c0_2 = arith.constant 0 : index
    %c0_3 = arith.constant 0 : index
    %2 = vector.load %arg2[%c0_2, %c0_3] : memref<128x896xf32, #tpu.memory_space<vmem>>, vector<128x128xf32>
    %c0_4 = arith.constant 0 : index
    %c0_5 = arith.constant 0 : index
    %3 = vector.load %arg3[%c0_4, %c0_5] : memref<1x896xf32, #tpu.memory_space<vmem>>, vector<1x128xf32>
    %cst = arith.constant dense<0.000000e+00> : vector<8x128xf32>
    %4 = tpu.matmul %0, %2, %cst {dimension_numbers = #tpu.dot_dimension_numbers<[1], [0], [0], [1], [0, 0, 1, 1], [], []>} : vector<8x128xf32>, vector<128x128xf32>, vector<8x128xf32> -> vector<8x128xf32>
    %5 = vector.broadcast %3 : vector<1x128xf32> to vector<8x128xf32>
    %6 = arith.addf %4, %5 : vector<8x128xf32>
    %cst_6 = arith.constant 0.000000e+00 : f32
    %7 = vector.broadcast %cst_6 : f32 to vector<8x128xf32>
    %8 = arith.maximumf %6, %7 : vector<8x128xf32>
    %c0_7 = arith.constant 0 : index
    %c128_8 = arith.constant 128 : index
    %9 = vector.load %arg2[%c0_7, %c128_8] : memref<128x896xf32, #tpu.memory_space<vmem>>, vector<128x128xf32>
    %c0_9 = arith.constant 0 : index
    %c128_10 = arith.constant 128 : index
    %10 = vector.load %arg3[%c0_9, %c128_10] : memref<1x896xf32, #tpu.memory_space<vmem>>, vector<1x128xf32>
    %cst_11 = arith.constant dense<0.000000e+00> : vector<8x128xf32>
    %11 = tpu.matmul %8, %9, %cst_11 {dimension_numbers = #tpu.dot_dimension_numbers<[1], [0], [0], [1], [0, 0, 1, 1], [], []>} : vector<8x128xf32>, vector<128x128xf32>, vector<8x128xf32> -> vector<8x128xf32>
    %12 = vector.broadcast %10 : vector<1x128xf32> to vector<8x128xf32>
    %13 = arith.addf %11, %12 : vector<8x128xf32>
    %cst_12 = arith.constant 0.000000e+00 : f32
    %14 = vector.broadcast %cst_12 : f32 to vector<8x128xf32>
    %15 = arith.maximumf %13, %14 : vector<8x128xf32>
    %c0_13 = arith.constant 0 : index
    %c256 = arith.constant 256 : index
    %16 = vector.load %arg2[%c0_13, %c256] : memref<128x896xf32, #tpu.memory_space<vmem>>, vector<128x256xf32>
    %c0_14 = arith.constant 0 : index
    %c256_15 = arith.constant 256 : index
    %17 = vector.load %arg3[%c0_14, %c256_15] : memref<1x896xf32, #tpu.memory_space<vmem>>, vector<1x256xf32>
    %cst_16 = arith.constant dense<0.000000e+00> : vector<8x256xf32>
    %18 = tpu.matmul %15, %16, %cst_16 {dimension_numbers = #tpu.dot_dimension_numbers<[1], [0], [0], [1], [0, 0, 1, 1], [], []>} : vector<8x128xf32>, vector<128x256xf32>, vector<8x256xf32> -> vector<8x256xf32>
    %19 = vector.broadcast %17 : vector<1x256xf32> to vector<8x256xf32>
    %20 = arith.addf %18, %19 : vector<8x256xf32>
    %21 = vector.extract_strided_slice %20 {offsets = [0, 0], sizes = [8, 128], strides = [1, 1]} : vector<8x256xf32> to vector<8x128xf32>
    %22 = vector.extract_strided_slice %20 {offsets = [0, 128], sizes = [8, 128], strides = [1, 1]} : vector<8x256xf32> to vector<8x128xf32>
    %cst_17 = arith.constant 5.000000e-01 : f32
    %23 = vector.broadcast %cst_17 : f32 to vector<8x128xf32>
    %24 = arith.mulf %23, %22 : vector<8x128xf32>
    %25 = math.exp %24 : vector<8x128xf32>
    %26 = arith.mulf %1, %25 : vector<8x128xf32>
    %27 = arith.addf %21, %26 : vector<8x128xf32>
    %c0_18 = arith.constant 0 : index
    %c512 = arith.constant 512 : index
    %28 = vector.load %arg2[%c0_18, %c512] : memref<128x896xf32, #tpu.memory_space<vmem>>, vector<128x128xf32>
    %c0_19 = arith.constant 0 : index
    %c512_20 = arith.constant 512 : index
    %29 = vector.load %arg3[%c0_19, %c512_20] : memref<1x896xf32, #tpu.memory_space<vmem>>, vector<1x128xf32>
    %cst_21 = arith.constant dense<0.000000e+00> : vector<8x128xf32>
    %30 = tpu.matmul %27, %28, %cst_21 {dimension_numbers = #tpu.dot_dimension_numbers<[1], [0], [0], [1], [0, 0, 1, 1], [], []>} : vector<8x128xf32>, vector<128x128xf32>, vector<8x128xf32> -> vector<8x128xf32>
    %31 = vector.broadcast %29 : vector<1x128xf32> to vector<8x128xf32>
    %32 = arith.addf %30, %31 : vector<8x128xf32>
    %cst_22 = arith.constant 0.000000e+00 : f32
    %33 = vector.broadcast %cst_22 : f32 to vector<8x128xf32>
    %34 = arith.maximumf %32, %33 : vector<8x128xf32>
    %c0_23 = arith.constant 0 : index
    %c640 = arith.constant 640 : index
    %35 = vector.load %arg2[%c0_23, %c640] : memref<128x896xf32, #tpu.memory_space<vmem>>, vector<128x128xf32>
    %c0_24 = arith.constant 0 : index
    %c640_25 = arith.constant 640 : index
    %36 = vector.load %arg3[%c0_24, %c640_25] : memref<1x896xf32, #tpu.memory_space<vmem>>, vector<1x128xf32>
    %cst_26 = arith.constant dense<0.000000e+00> : vector<8x128xf32>
    %37 = tpu.matmul %34, %35, %cst_26 {dimension_numbers = #tpu.dot_dimension_numbers<[1], [0], [0], [1], [0, 0, 1, 1], [], []>} : vector<8x128xf32>, vector<128x128xf32>, vector<8x128xf32> -> vector<8x128xf32>
    %38 = vector.broadcast %36 : vector<1x128xf32> to vector<8x128xf32>
    %39 = arith.addf %37, %38 : vector<8x128xf32>
    %cst_27 = arith.constant 0.000000e+00 : f32
    %40 = vector.broadcast %cst_27 : f32 to vector<8x128xf32>
    %41 = arith.maximumf %39, %40 : vector<8x128xf32>
    %c0_28 = arith.constant 0 : index
    %c768 = arith.constant 768 : index
    %42 = vector.load %arg2[%c0_28, %c768] : memref<128x896xf32, #tpu.memory_space<vmem>>, vector<128x128xf32>
    %c0_29 = arith.constant 0 : index
    %c768_30 = arith.constant 768 : index
    %43 = vector.load %arg3[%c0_29, %c768_30] : memref<1x896xf32, #tpu.memory_space<vmem>>, vector<1x128xf32>
    %cst_31 = arith.constant dense<0.000000e+00> : vector<8x128xf32>
    %44 = tpu.matmul %41, %42, %cst_31 {dimension_numbers = #tpu.dot_dimension_numbers<[1], [0], [0], [1], [0, 0, 1, 1], [], []>} : vector<8x128xf32>, vector<128x128xf32>, vector<8x128xf32> -> vector<8x128xf32>
    %45 = vector.broadcast %43 : vector<1x128xf32> to vector<8x128xf32>
    %46 = arith.addf %44, %45 : vector<8x128xf32>
    %c0_32 = arith.constant 0 : index
    %c0_33 = arith.constant 0 : index
    %47 = vector.load %arg4[%c0_32, %c0_33] : memref<8x384xf32, #tpu.memory_space<vmem>>, vector<8x128xf32>
    tpu.vector_store %arg4[%c0_32, %c0_33], %46 {strides = array<i32>} : memref<8x384xf32, #tpu.memory_space<vmem>>, vector<8x128xf32>,
    %c0_34 = arith.constant 0 : index
    %c128_35 = arith.constant 128 : index
    %48 = vector.load %arg4[%c0_34, %c128_35] : memref<8x384xf32, #tpu.memory_space<vmem>>, vector<8x128xf32>
    tpu.vector_store %arg4[%c0_34, %c128_35], %21 {strides = array<i32>} : memref<8x384xf32, #tpu.memory_space<vmem>>, vector<8x128xf32>,
    %c0_36 = arith.constant 0 : index
    %c256_37 = arith.constant 256 : index
    %49 = vector.load %arg4[%c0_36, %c256_37] : memref<8x384xf32, #tpu.memory_space<vmem>>, vector<8x128xf32>
    tpu.vector_store %arg4[%c0_36, %c256_37], %22 {strides = array<i32>} : memref<8x384xf32, #tpu.memory_space<vmem>>, vector<8x128xf32>,
    return
  }
  func.func @transform_0(%arg0: i32) -> (i32, i32) {
    %c0_i32 = arith.constant 0 : i32
    %c0_i32_0 = arith.constant 0 : i32
    return %arg0, %c0_i32 : i32, i32
  }
  func.func @transform_1(%arg0: i32) -> (i32, i32) {
    %c0_i32 = arith.constant 0 : i32
    %c0_i32_0 = arith.constant 0 : i32
    %c0_i32_1 = arith.constant 0 : i32
    return %c0_i32, %c0_i32_0 : i32, i32
  }
  func.func @transform_2(%arg0: i32) -> (i32, i32) {
    %c0_i32 = arith.constant 0 : i32
    %c0_i32_0 = arith.constant 0 : i32
    %c0_i32_1 = arith.constant 0 : i32
    return %c0_i32, %c0_i32_0 : i32, i32
  }
  func.func @transform_3(%arg0: i32) -> (i32, i32) {
    %c0_i32 = arith.constant 0 : i32
    %c0_i32_0 = arith.constant 0 : i32
    return %arg0, %c0_i32 : i32, i32
  }
}

</mosaic_0001>

<llo_original>
// kernel: vae_forward.1
$region0: #{vae_forward.1}
  #allocation0 [shape = 'u32[]', space=smem, size = 0x4, offset = 0x4, fixed_abs, tag = 'smem constant byte address 0x4 - core index']
  #allocation1 [shape = 'u32[144,128]{1,0:T(1,128)}', space=vmem, size = 0x12000, scoped, tag = 'internal scratch']
  %s0 = inlined_call_operand.vmem [shape: f32[8,256], index: 0, kind: input, shape index: {}]
  %s1 = inlined_call_operand.hbm [shape: f32[128,896], index: 1, kind: input, shape index: {}]
  %s2 = inlined_call_operand.vmem [shape: f32[1,896], index: 2, kind: input, shape index: {}]
  %s3 = inlined_call_operand.vmem [shape: f32[8,384], index: 3, kind: output, shape index: {}]
  %s4 = sld [smem:[#allocation0]]
  $region26: #{vae_forward.1} parent=0
    _
  %s6 = ssub.s32 1, %s4
  %s7 = scalar_select 0, %s6, %s4
  $region1: #{vae_forward.1} parent=0
    #allocation2 [shape = 'u8[458752]{0}', space=vmem, size = 0x70000, scoped, tag = 'input window, operand 1, single buffered']
    #allocation3 [shape = 's32[1]{0}', space=sflag, size = 0x4, scoped, tag = 'scoped memory for vae_forward.1']
    %8 = vsyncpa [#allocation3], 0
    // Predicated region
    $region2: #{vae_forward.1} parent=1 // pred_check
      _
    $region3: #{vae_forward.1} parent=1 // pred_check_branch
      %10 = sbr.rel (0) target = $region5
    $region4: #{vae_forward.1} parent=1 // pred_region
      _
    $region5: #{vae_forward.1} parent=1 // pred_fallthru
      _
    // Predicated region
    $region6: #{vae_forward.1} parent=1 // pred_check
      _
    $region7: #{vae_forward.1} parent=1 // pred_check_branch
      %12 = sbr.rel (0) target = $region9
    $region8: #{vae_forward.1} parent=1 // pred_region
      %s14 = ssub.s32 14336, 14336
      %15 = vsyncadd [#allocation3], %s14
      %s16 = sshll.u32 [#allocation2], 4
      %s17 = int_to_ptr.vmem [resolvable:$true] %s16
      %22 = dma.hbm_to_vmem [thread:$0]  %s1, 14336, %s17, [#allocation3], 896, 896, 56
    $region9: #{vae_forward.1} parent=1 // pred_fallthru
      _
    // Predicated region
    $region10: #{vae_forward.1} parent=1 // pred_check
      _
    $region11: #{vae_forward.1} parent=1 // pred_check_branch
      %24 = sbr.rel (0) target = $region13
    $region12: #{vae_forward.1} parent=1 // pred_region
      _
    $region13: #{vae_forward.1} parent=1 // pred_fallthru
      _
    // Predicated region
    $region14: #{vae_forward.1} parent=1 // pred_check
      _
    $region15: #{vae_forward.1} parent=1 // pred_check_branch
      %26 = sbr.rel (0) target = $region17
    $region16: #{vae_forward.1} parent=1 // pred_region
      %27 = dma.done [#allocation3], 14336
    $region17: #{vae_forward.1} parent=1 // pred_fallthru
      _
    %v28 = vld [vmem:[%s0] sm:$0xff]
    %v29 = vld [vmem:[%s0 + $0x8] sm:$0xff]
    %v30 = vld [vmem:[#allocation2] sm:$0xff]
    %v31 = vld [vmem:[#allocation2 + $0x38] sm:$0xff]
    %v32 = vld [vmem:[#allocation2 + $0x70] sm:$0xff]
    %v33 = vld [vmem:[#allocation2 + $0xa8] sm:$0xff]
    %v34 = vld [vmem:[#allocation2 + $0xe0] sm:$0xff]
    %v35 = vld [vmem:[#allocation2 + $0x118] sm:$0xff]
    %v36 = vld [vmem:[#allocation2 + $0x150] sm:$0xff]
    %v37 = vld [vmem:[#allocation2 + $0x188] sm:$0xff]
    %v38 = vld [vmem:[#allocation2 + $0x1c0] sm:$0xff]
    %v39 = vld [vmem:[#allocation2 + $0x1f8] sm:$0xff]
    %v40 = vld [vmem:[#allocation2 + $0x230] sm:$0xff]
    %v41 = vld [vmem:[#allocation2 + $0x268] sm:$0xff]
    %v42 = vld [vmem:[#allocation2 + $0x2a0] sm:$0xff]
    %v43 = vld [vmem:[#allocation2 + $0x2d8] sm:$0xff]
    %v44 = vld [vmem:[#allocation2 + $0x310] sm:$0xff]
    %v45 = vld [vmem:[#allocation2 + $0x348] sm:$0xff]
    %v46 = vld [vmem:[%s2] sm:$0x1]
    %v48 = vlaneseq
    %v49 = vshrl.u32 %v48, 7
    %v50 = vsub.s32 0, %v49
    %v51 = vrot.slane %v46, %v50
    %53 = vmatprep.subr.mxu0 0.0
    %54 = vmatpush1.msra.mxu0 %v45
    %55 = vmatprep.subr.mxu0 0.0
    %56 = vmatpush1.msra.mxu0 %v44
    %57 = vmatprep.subr.mxu0 0.0
    %58 = vmatpush1.msra.mxu0 %v43
    %59 = vmatprep.subr.mxu0 0.0
    %60 = vmatpush1.msra.mxu0 %v42
    %61 = vmatprep.subr.mxu0 0.0
    %62 = vmatpush1.msra.mxu0 %v41
    %63 = vmatprep.subr.mxu0 0.0
    %64 = vmatpush1.msra.mxu0 %v40
    %65 = vmatprep.subr.mxu0 0.0
    %66 = vmatpush1.msra.mxu0 %v39
    %67 = vmatprep.subr.mxu0 0.0
    %68 = vmatpush1.msra.mxu0 %v38
    %69 = vmatprep.subr.mxu0 0.0
    %70 = vmatpush1.msra.mxu0 %v37
    %71 = vmatprep.subr.mxu0 0.0
    %72 = vmatpush1.msra.mxu0 %v36
    %73 = vmatprep.subr.mxu0 0.0
    %74 = vmatpush1.msra.mxu0 %v35
    %75 = vmatprep.subr.mxu0 0.0
    %76 = vmatpush1.msra.mxu0 %v34
    %77 = vmatprep.subr.mxu0 0.0
    %78 = vmatpush1.msra.mxu0 %v33
    %79 = vmatprep.subr.mxu0 0.0
    %80 = vmatpush1.msra.mxu0 %v32
    %81 = vmatprep.subr.mxu0 0.0
    %82 = vmatpush1.msra.mxu0 %v31
    %83 = vmatprep.subr.mxu0 0.0
    %84 = vmatpush1.msra.mxu0 %v30
    %85 = vmatprep.subr.mxu0 0.0
    %86 = vmatpush2.msra.mxu0 0.0
    %87 = vmatprep.subr.mxu0 0.0
    %88 = vmatpush2.msra.mxu0 0.0
    %89 = vmatprep.subr.mxu0 0.0
    %90 = vmatpush2.msra.mxu0 0.0
    %91 = vmatprep.subr.mxu0 0.0
    %92 = vmatpush2.msra.mxu0 0.0
    %93 = vmatprep.subr.mxu0 0.0
    %94 = vmatpush2.msra.mxu0 0.0
    %95 = vmatprep.subr.mxu0 0.0
    %96 = vmatpush2.msra.mxu0 0.0
    %97 = vmatprep.subr.mxu0 0.0
    %98 = vmatpush2.msra.mxu0 0.0
    %99 = vmatprep.subr.mxu0 0.0
    %100 = vmatpush2.msra.mxu0 0.0
    %101 = vmatprep.subr.mxu0 0.0
    %102 = vmatpush2.msra.mxu0 0.0
    %103 = vmatprep.subr.mxu0 0.0
    %104 = vmatpush2.msra.mxu0 0.0
    %105 = vmatprep.subr.mxu0 0.0
    %106 = vmatpush2.msra.mxu0 0.0
    %107 = vmatprep.subr.mxu0 0.0
    %108 = vmatpush2.msra.mxu0 0.0
    %109 = vmatprep.subr.mxu0 0.0
    %110 = vmatpush2.msra.mxu0 0.0
    %111 = vmatprep.subr.mxu0 0.0
    %112 = vmatpush2.msra.mxu0 0.0
    %113 = vmatprep.subr.mxu0 0.0
    %114 = vmatpush2.msra.mxu0 0.0
    %115 = vmatprep.subr.mxu0 0.0
    %116 = vmatpush2.msra.mxu0 0.0
    %117 = vmatprep.mubr.f32.mxu0 0.0
    %118 = vmatmul.mubr.f32.gmra.mxu0 %v28
    %v119 = vpop.f32.mrf.mxu0
    %v120 = vadd.f32 %v51, %v119
    %v121 = vpop.f32.mrf.mxu0
    %122 = vdwg.mxu0
    %v123 = vmax.f32 %v120, 0.0
    %v124 = vld [vmem:[#allocation2 + $0x8] sm:$0xff]
    %v125 = vld [vmem:[#allocation2 + $0x40] sm:$0xff]
    %v126 = vld [vmem:[#allocation2 + $0x78] sm:$0xff]
    %v127 = vld [vmem:[#allocation2 + $0xb0] sm:$0xff]
    %v128 = vld [vmem:[#allocation2 + $0xe8] sm:$0xff]
    %v129 = vld [vmem:[#allocation2 + $0x120] sm:$0xff]
    %v130 = vld [vmem:[#allocation2 + $0x158] sm:$0xff]
    %v131 = vld [vmem:[#allocation2 + $0x190] sm:$0xff]
    %v132 = vld [vmem:[#allocation2 + $0x1c8] sm:$0xff]
    %v133 = vld [vmem:[#allocation2 + $0x200] sm:$0xff]
    %v134 = vld [vmem:[#allocation2 + $0x238] sm:$0xff]
    %v135 = vld [vmem:[#allocation2 + $0x270] sm:$0xff]
    %v136 = vld [vmem:[#allocation2 + $0x2a8] sm:$0xff]
    %v137 = vld [vmem:[#allocation2 + $0x2e0] sm:$0xff]
    %v138 = vld [vmem:[#allocation2 + $0x318] sm:$0xff]
    %v139 = vld [vmem:[#allocation2 + $0x350] sm:$0xff]
    %v140 = vld [vmem:[%s2 + $0x1] sm:$0x1]
    %v142 = vlaneseq
    %v143 = vshrl.u32 %v142, 7
    %v144 = vsub.s32 0, %v143
    %v145 = vrot.slane %v140, %v144
    %147 = vmatprep.subr.mxu0 0.0
    %148 = vmatpush1.msra.mxu0 %v139
    %149 = vmatprep.subr.mxu0 0.0
    %150 = vmatpush1.msra.mxu0 %v138
    %151 = vmatprep.subr.mxu0 0.0
    %152 = vmatpush1.msra.mxu0 %v137
    %153 = vmatprep.subr.mxu0 0.0
    %154 = vmatpush1.msra.mxu0 %v136
    %155 = vmatprep.subr.mxu0 0.0
    %156 = vmatpush1.msra.mxu0 %v135
    %157 = vmatprep.subr.mxu0 0.0
    %158 = vmatpush1.msra.mxu0 %v134
    %159 = vmatprep.subr.mxu0 0.0
    %160 = vmatpush1.msra.mxu0 %v133
    %161 = vmatprep.subr.mxu0 0.0
    %162 = vmatpush1.msra.mxu0 %v132
    %163 = vmatprep.subr.mxu0 0.0
    %164 = vmatpush1.msra.mxu0 %v131
    %165 = vmatprep.subr.mxu0 0.0
    %166 = vmatpush1.msra.mxu0 %v130
    %167 = vmatprep.subr.mxu0 0.0
    %168 = vmatpush1.msra.mxu0 %v129
    %169 = vmatprep.subr.mxu0 0.0
    %170 = vmatpush1.msra.mxu0 %v128
    %171 = vmatprep.subr.mxu0 0.0
    %172 = vmatpush1.msra.mxu0 %v127
    %173 = vmatprep.subr.mxu0 0.0
    %174 = vmatpush1.msra.mxu0 %v126
    %175 = vmatprep.subr.mxu0 0.0
    %176 = vmatpush1.msra.mxu0 %v125
    %177 = vmatprep.subr.mxu0 0.0
    %178 = vmatpush1.msra.mxu0 %v124
    %179 = vmatprep.subr.mxu0 0.0
    %180 = vmatpush2.msra.mxu0 0.0
    %181 = vmatprep.subr.mxu0 0.0
    %182 = vmatpush2.msra.mxu0 0.0
    %183 = vmatprep.subr.mxu0 0.0
    %184 = vmatpush2.msra.mxu0 0.0
    %185 = vmatprep.subr.mxu0 0.0
    %186 = vmatpush2.msra.mxu0 0.0
    %187 = vmatprep.subr.mxu0 0.0
    %188 = vmatpush2.msra.mxu0 0.0
    %189 = vmatprep.subr.mxu0 0.0
    %190 = vmatpush2.msra.mxu0 0.0
    %191 = vmatprep.subr.mxu0 0.0
    %192 = vmatpush2.msra.mxu0 0.0
    %193 = vmatprep.subr.mxu0 0.0
    %194 = vmatpush2.msra.mxu0 0.0
    %195 = vmatprep.subr.mxu0 0.0
    %196 = vmatpush2.msra.mxu0 0.0
    %197 = vmatprep.subr.mxu0 0.0
    %198 = vmatpush2.msra.mxu0 0.0
    %199 = vmatprep.subr.mxu0 0.0
    %200 = vmatpush2.msra.mxu0 0.0
    %201 = vmatprep.subr.mxu0 0.0
    %202 = vmatpush2.msra.mxu0 0.0
    %203 = vmatprep.subr.mxu0 0.0
    %204 = vmatpush2.msra.mxu0 0.0
    %205 = vmatprep.subr.mxu0 0.0
    %206 = vmatpush2.msra.mxu0 0.0
    %207 = vmatprep.subr.mxu0 0.0
    %208 = vmatpush2.msra.mxu0 0.0
    %209 = vmatprep.subr.mxu0 0.0
    %210 = vmatpush2.msra.mxu0 0.0
    %211 = vmatprep.mubr.f32.mxu0 0.0
    %212 = vmatmul.mubr.f32.gmra.mxu0 %v123
    %v213 = vpop.f32.mrf.mxu0
    %v214 = vadd.f32 %v145, %v213
    %v215 = vpop.f32.mrf.mxu0
    %216 = vdwg.mxu0
    %v217 = vmax.f32 %v214, 0.0
    %v218 = vld [vmem:[#allocation2 + $0x10] sm:$0xff]
    %v219 = vld [vmem:[#allocation2 + $0x18] sm:$0xff]
    %v220 = vld [vmem:[#allocation2 + $0x48] sm:$0xff]
    %v221 = vld [vmem:[#allocation2 + $0x50] sm:$0xff]
    %v222 = vld [vmem:[#allocation2 + $0x80] sm:$0xff]
    %v223 = vld [vmem:[#allocation2 + $0x88] sm:$0xff]
    %v224 = vld [vmem:[#allocation2 + $0xb8] sm:$0xff]
    %v225 = vld [vmem:[#allocation2 + $0xc0] sm:$0xff]
    %v226 = vld [vmem:[#allocation2 + $0xf0] sm:$0xff]
    %v227 = vld [vmem:[#allocation2 + $0xf8] sm:$0xff]
    %v228 = vld [vmem:[#allocation2 + $0x128] sm:$0xff]
    %v229 = vld [vmem:[#allocation2 + $0x130] sm:$0xff]
    %v230 = vld [vmem:[#allocation2 + $0x160] sm:$0xff]
    %v231 = vld [vmem:[#allocation2 + $0x168] sm:$0xff]
    %v232 = vld [vmem:[#allocation2 + $0x198] sm:$0xff]
    %v233 = vld [vmem:[#allocation2 + $0x1a0] sm:$0xff]
    %v234 = vld [vmem:[#allocation2 + $0x1d0] sm:$0xff]
    %v235 = vld [vmem:[#allocation2 + $0x1d8] sm:$0xff]
    %v236 = vld [vmem:[#allocation2 + $0x208] sm:$0xff]
    %v237 = vld [vmem:[#allocation2 + $0x210] sm:$0xff]
    %v238 = vld [vmem:[#allocation2 + $0x240] sm:$0xff]
    %v239 = vld [vmem:[#allocation2 + $0x248] sm:$0xff]
    %v240 = vld [vmem:[#allocation2 + $0x278] sm:$0xff]
    %v241 = vld [vmem:[#allocation2 + $0x280] sm:$0xff]
    %v242 = vld [vmem:[#allocation2 + $0x2b0] sm:$0xff]
    %v243 = vld [vmem:[#allocation2 + $0x2b8] sm:$0xff]
    %v244 = vld [vmem:[#allocation2 + $0x2e8] sm:$0xff]
    %v245 = vld [vmem:[#allocation2 + $0x2f0] sm:$0xff]
    %v246 = vld [vmem:[#allocation2 + $0x320] sm:$0xff]
    %v247 = vld [vmem:[#allocation2 + $0x328] sm:$0xff]
    %v248 = vld [vmem:[#allocation2 + $0x358] sm:$0xff]
    %v249 = vld [vmem:[#allocation2 + $0x360] sm:$0xff]
    %v250 = vld [vmem:[%s2 + $0x2] sm:$0x3]
    %v252 = vlaneseq
    %v253 = vshrl.u32 %v252, 7
    %v254 = vsub.s32 0, %v253
    %v255 = vrot.slane %v250, %v254
    %v256 = vlaneseq
    %v257 = vshrl.u32 %v256, 7
    %v258 = vsub.s32 1, %v257
    %v259 = vrot.slane %v250, %v258
    %262 = vmatprep.subr.mxu0 %v249
    %263 = vmatpush1.msra.mxu0 %v248
    %264 = vmatprep.subr.mxu0 %v247
    %265 = vmatpush1.msra.mxu0 %v246
    %266 = vmatprep.subr.mxu0 %v245
    %267 = vmatpush1.msra.mxu0 %v244
    %268 = vmatprep.subr.mxu0 %v243
    %269 = vmatpush1.msra.mxu0 %v242
    %270 = vmatprep.subr.mxu0 %v241
    %271 = vmatpush1.msra.mxu0 %v240
    %272 = vmatprep.subr.mxu0 %v239
    %273 = vmatpush1.msra.mxu0 %v238
    %274 = vmatprep.subr.mxu0 %v237
    %275 = vmatpush1.msra.mxu0 %v236
    %276 = vmatprep.subr.mxu0 %v235
    %277 = vmatpush1.msra.mxu0 %v234
    %278 = vmatprep.subr.mxu0 %v233
    %279 = vmatpush1.msra.mxu0 %v232
    %280 = vmatprep.subr.mxu0 %v231
    %281 = vmatpush1.msra.mxu0 %v230
    %282 = vmatprep.subr.mxu0 %v229
    %283 = vmatpush1.msra.mxu0 %v228
    %284 = vmatprep.subr.mxu0 %v227
    %285 = vmatpush1.msra.mxu0 %v226
    %286 = vmatprep.subr.mxu0 %v225
    %287 = vmatpush1.msra.mxu0 %v224
    %288 = vmatprep.subr.mxu0 %v223
    %289 = vmatpush1.msra.mxu0 %v222
    %290 = vmatprep.subr.mxu0 %v221
    %291 = vmatpush1.msra.mxu0 %v220
    %292 = vmatprep.subr.mxu0 %v219
    %293 = vmatpush1.msra.mxu0 %v218
    %294 = vmatprep.subr.mxu0 0.0
    %295 = vmatpush2.msra.mxu0 0.0
    %296 = vmatprep.subr.mxu0 0.0
    %297 = vmatpush2.msra.mxu0 0.0
    %298 = vmatprep.subr.mxu0 0.0
    %299 = vmatpush2.msra.mxu0 0.0
    %300 = vmatprep.subr.mxu0 0.0
    %301 = vmatpush2.msra.mxu0 0.0
    %302 = vmatprep.subr.mxu0 0.0
    %303 = vmatpush2.msra.mxu0 0.0
    %304 = vmatprep.subr.mxu0 0.0
    %305 = vmatpush2.msra.mxu0 0.0
    %306 = vmatprep.subr.mxu0 0.0
    %307 = vmatpush2.msra.mxu0 0.0
    %308 = vmatprep.subr.mxu0 0.0
    %309 = vmatpush2.msra.mxu0 0.0
    %310 = vmatprep.subr.mxu0 0.0
    %311 = vmatpush2.msra.mxu0 0.0
    %312 = vmatprep.subr.mxu0 0.0
    %313 = vmatpush2.msra.mxu0 0.0
    %314 = vmatprep.subr.mxu0 0.0
    %315 = vmatpush2.msra.mxu0 0.0
    %316 = vmatprep.subr.mxu0 0.0
    %317 = vmatpush2.msra.mxu0 0.0
    %318 = vmatprep.subr.mxu0 0.0
    %319 = vmatpush2.msra.mxu0 0.0
    %320 = vmatprep.subr.mxu0 0.0
    %321 = vmatpush2.msra.mxu0 0.0
    %322 = vmatprep.subr.mxu0 0.0
    %323 = vmatpush2.msra.mxu0 0.0
    %324 = vmatprep.subr.mxu0 0.0
    %325 = vmatpush2.msra.mxu0 0.0
    %326 = vmatprep.mubr.f32.mxu0 0.0
    %327 = vmatmul.mubr.f32.gmra.mxu0 %v217
    %v328 = vpop.f32.mrf.mxu0
    %v329 = vadd.f32 %v255, %v328
    %v330 = vpop.f32.mrf.mxu0
    %v331 = vadd.f32 %v259, %v330
    %332 = vdwg.mxu0
    %v333 = vmul.f32 %v331, 0.5
    %v334 = vmul.f32 %v333, 1.442695
    %v335 = vpow.pop %v334
    %v336 = vmul.f32 %v29, %v335
    %v337 = vadd.f32 %v329, %v336
    %v338 = vld [vmem:[#allocation2 + $0x20] sm:$0xff]
    %v339 = vld [vmem:[#allocation2 + $0x58] sm:$0xff]
    %v340 = vld [vmem:[#allocation2 + $0x90] sm:$0xff]
    %v341 = vld [vmem:[#allocation2 + $0xc8] sm:$0xff]
    %v342 = vld [vmem:[#allocation2 + $0x100] sm:$0xff]
    %v343 = vld [vmem:[#allocation2 + $0x138] sm:$0xff]
    %v344 = vld [vmem:[#allocation2 + $0x170] sm:$0xff]
    %v345 = vld [vmem:[#allocation2 + $0x1a8] sm:$0xff]
    %v346 = vld [vmem:[#allocation2 + $0x1e0] sm:$0xff]
    %v347 = vld [vmem:[#allocation2 + $0x218] sm:$0xff]
    %v348 = vld [vmem:[#allocation2 + $0x250] sm:$0xff]
    %v349 = vld [vmem:[#allocation2 + $0x288] sm:$0xff]
    %v350 = vld [vmem:[#allocation2 + $0x2c0] sm:$0xff]
    %v351 = vld [vmem:[#allocation2 + $0x2f8] sm:$0xff]
    %v352 = vld [vmem:[#allocation2 + $0x330] sm:$0xff]
    %v353 = vld [vmem:[#allocation2 + $0x368] sm:$0xff]
    %v354 = vld [vmem:[%s2 + $0x4] sm:$0x1]
    %v356 = vlaneseq
    %v357 = vshrl.u32 %v356, 7
    %v358 = vsub.s32 0, %v357
    %v359 = vrot.slane %v354, %v358
    %361 = vmatprep.subr.mxu0 0.0
    %362 = vmatpush1.msra.mxu0 %v353
    %363 = vmatprep.subr.mxu0 0.0
    %364 = vmatpush1.msra.mxu0 %v352
    %365 = vmatprep.subr.mxu0 0.0
    %366 = vmatpush1.msra.mxu0 %v351
    %367 = vmatprep.subr.mxu0 0.0
    %368 = vmatpush1.msra.mxu0 %v350
    %369 = vmatprep.subr.mxu0 0.0
    %370 = vmatpush1.msra.mxu0 %v349
    %371 = vmatprep.subr.mxu0 0.0
    %372 = vmatpush1.msra.mxu0 %v348
    %373 = vmatprep.subr.mxu0 0.0
    %374 = vmatpush1.msra.mxu0 %v347
    %375 = vmatprep.subr.mxu0 0.0
    %376 = vmatpush1.msra.mxu0 %v346
    %377 = vmatprep.subr.mxu0 0.0
    %378 = vmatpush1.msra.mxu0 %v345
    %379 = vmatprep.subr.mxu0 0.0
    %380 = vmatpush1.msra.mxu0 %v344
    %381 = vmatprep.subr.mxu0 0.0
    %382 = vmatpush1.msra.mxu0 %v343
    %383 = vmatprep.subr.mxu0 0.0
    %384 = vmatpush1.msra.mxu0 %v342
    %385 = vmatprep.subr.mxu0 0.0
    %386 = vmatpush1.msra.mxu0 %v341
    %387 = vmatprep.subr.mxu0 0.0
    %388 = vmatpush1.msra.mxu0 %v340
    %389 = vmatprep.subr.mxu0 0.0
    %390 = vmatpush1.msra.mxu0 %v339
    %391 = vmatprep.subr.mxu0 0.0
    %392 = vmatpush1.msra.mxu0 %v338
    %393 = vmatprep.subr.mxu0 0.0
    %394 = vmatpush2.msra.mxu0 0.0
    %395 = vmatprep.subr.mxu0 0.0
    %396 = vmatpush2.msra.mxu0 0.0
    %397 = vmatprep.subr.mxu0 0.0
    %398 = vmatpush2.msra.mxu0 0.0
    %399 = vmatprep.subr.mxu0 0.0
    %400 = vmatpush2.msra.mxu0 0.0
    %401 = vmatprep.subr.mxu0 0.0
    %402 = vmatpush2.msra.mxu0 0.0
    %403 = vmatprep.subr.mxu0 0.0
    %404 = vmatpush2.msra.mxu0 0.0
    %405 = vmatprep.subr.mxu0 0.0
    %406 = vmatpush2.msra.mxu0 0.0
    %407 = vmatprep.subr.mxu0 0.0
    %408 = vmatpush2.msra.mxu0 0.0
    %409 = vmatprep.subr.mxu0 0.0
    %410 = vmatpush2.msra.mxu0 0.0
    %411 = vmatprep.subr.mxu0 0.0
    %412 = vmatpush2.msra.mxu0 0.0
    %413 = vmatprep.subr.mxu0 0.0
    %414 = vmatpush2.msra.mxu0 0.0
    %415 = vmatprep.subr.mxu0 0.0
    %416 = vmatpush2.msra.mxu0 0.0
    %417 = vmatprep.subr.mxu0 0.0
    %418 = vmatpush2.msra.mxu0 0.0
    %419 = vmatprep.subr.mxu0 0.0
    %420 = vmatpush2.msra.mxu0 0.0
    %421 = vmatprep.subr.mxu0 0.0
    %422 = vmatpush2.msra.mxu0 0.0
    %423 = vmatprep.subr.mxu0 0.0
    %424 = vmatpush2.msra.mxu0 0.0
    %425 = vmatprep.mubr.f32.mxu0 0.0
    %426 = vmatmul.mubr.f32.gmra.mxu0 %v337
    %v427 = vpop.f32.mrf.mxu0
    %v428 = vadd.f32 %v359, %v427
    %v429 = vpop.f32.mrf.mxu0
    %430 = vdwg.mxu0
    %v431 = vmax.f32 %v428, 0.0
    %v432 = vld [vmem:[#allocation2 + $0x28] sm:$0xff]
    %v433 = vld [vmem:[#allocation2 + $0x60] sm:$0xff]
    %v434 = vld [vmem:[#allocation2 + $0x98] sm:$0xff]
    %v435 = vld [vmem:[#allocation2 + $0xd0] sm:$0xff]
    %v436 = vld [vmem:[#allocation2 + $0x108] sm:$0xff]
    %v437 = vld [vmem:[#allocation2 + $0x140] sm:$0xff]
    %v438 = vld [vmem:[#allocation2 + $0x178] sm:$0xff]
    %v439 = vld [vmem:[#allocation2 + $0x1b0] sm:$0xff]
    %v440 = vld [vmem:[#allocation2 + $0x1e8] sm:$0xff]
    %v441 = vld [vmem:[#allocation2 + $0x220] sm:$0xff]
    %v442 = vld [vmem:[#allocation2 + $0x258] sm:$0xff]
    %v443 = vld [vmem:[#allocation2 + $0x290] sm:$0xff]
    %v444 = vld [vmem:[#allocation2 + $0x2c8] sm:$0xff]
    %v445 = vld [vmem:[#allocation2 + $0x300] sm:$0xff]
    %v446 = vld [vmem:[#allocation2 + $0x338] sm:$0xff]
    %v447 = vld [vmem:[#allocation2 + $0x370] sm:$0xff]
    %v448 = vld [vmem:[%s2 + $0x5] sm:$0x1]
    %v450 = vlaneseq
    %v451 = vshrl.u32 %v450, 7
    %v452 = vsub.s32 0, %v451
    %v453 = vrot.slane %v448, %v452
    %455 = vmatprep.subr.mxu0 0.0
    %456 = vmatpush1.msra.mxu0 %v447
    %457 = vmatprep.subr.mxu0 0.0
    %458 = vmatpush1.msra.mxu0 %v446
    %459 = vmatprep.subr.mxu0 0.0
    %460 = vmatpush1.msra.mxu0 %v445
    %461 = vmatprep.subr.mxu0 0.0
    %462 = vmatpush1.msra.mxu0 %v444
    %463 = vmatprep.subr.mxu0 0.0
    %464 = vmatpush1.msra.mxu0 %v443
    %465 = vmatprep.subr.mxu0 0.0
    %466 = vmatpush1.msra.mxu0 %v442
    %467 = vmatprep.subr.mxu0 0.0
    %468 = vmatpush1.msra.mxu0 %v441
    %469 = vmatprep.subr.mxu0 0.0
    %470 = vmatpush1.msra.mxu0 %v440
    %471 = vmatprep.subr.mxu0 0.0
    %472 = vmatpush1.msra.mxu0 %v439
    %473 = vmatprep.subr.mxu0 0.0
    %474 = vmatpush1.msra.mxu0 %v438
    %475 = vmatprep.subr.mxu0 0.0
    %476 = vmatpush1.msra.mxu0 %v437
    %477 = vmatprep.subr.mxu0 0.0
    %478 = vmatpush1.msra.mxu0 %v436
    %479 = vmatprep.subr.mxu0 0.0
    %480 = vmatpush1.msra.mxu0 %v435
    %481 = vmatprep.subr.mxu0 0.0
    %482 = vmatpush1.msra.mxu0 %v434
    %483 = vmatprep.subr.mxu0 0.0
    %484 = vmatpush1.msra.mxu0 %v433
    %485 = vmatprep.subr.mxu0 0.0
    %486 = vmatpush1.msra.mxu0 %v432
    %487 = vmatprep.subr.mxu0 0.0
    %488 = vmatpush2.msra.mxu0 0.0
    %489 = vmatprep.subr.mxu0 0.0
    %490 = vmatpush2.msra.mxu0 0.0
    %491 = vmatprep.subr.mxu0 0.0
    %492 = vmatpush2.msra.mxu0 0.0
    %493 = vmatprep.subr.mxu0 0.0
    %494 = vmatpush2.msra.mxu0 0.0
    %495 = vmatprep.subr.mxu0 0.0
    %496 = vmatpush2.msra.mxu0 0.0
    %497 = vmatprep.subr.mxu0 0.0
    %498 = vmatpush2.msra.mxu0 0.0
    %499 = vmatprep.subr.mxu0 0.0
    %500 = vmatpush2.msra.mxu0 0.0
    %501 = vmatprep.subr.mxu0 0.0
    %502 = vmatpush2.msra.mxu0 0.0
    %503 = vmatprep.subr.mxu0 0.0
    %504 = vmatpush2.msra.mxu0 0.0
    %505 = vmatprep.subr.mxu0 0.0
    %506 = vmatpush2.msra.mxu0 0.0
    %507 = vmatprep.subr.mxu0 0.0
    %508 = vmatpush2.msra.mxu0 0.0
    %509 = vmatprep.subr.mxu0 0.0
    %510 = vmatpush2.msra.mxu0 0.0
    %511 = vmatprep.subr.mxu0 0.0
    %512 = vmatpush2.msra.mxu0 0.0
    %513 = vmatprep.subr.mxu0 0.0
    %514 = vmatpush2.msra.mxu0 0.0
    %515 = vmatprep.subr.mxu0 0.0
    %516 = vmatpush2.msra.mxu0 0.0
    %517 = vmatprep.subr.mxu0 0.0
    %518 = vmatpush2.msra.mxu0 0.0
    %519 = vmatprep.mubr.f32.mxu0 0.0
    %520 = vmatmul.mubr.f32.gmra.mxu0 %v431
    %v521 = vpop.f32.mrf.mxu0
    %v522 = vadd.f32 %v453, %v521
    %v523 = vpop.f32.mrf.mxu0
    %524 = vdwg.mxu0
    %v525 = vmax.f32 %v522, 0.0
    %v526 = vld [vmem:[#allocation2 + $0x30] sm:$0xff]
    %v527 = vld [vmem:[#allocation2 + $0x68] sm:$0xff]
    %v528 = vld [vmem:[#allocation2 + $0xa0] sm:$0xff]
    %v529 = vld [vmem:[#allocation2 + $0xd8] sm:$0xff]
    %v530 = vld [vmem:[#allocation2 + $0x110] sm:$0xff]
    %v531 = vld [vmem:[#allocation2 + $0x148] sm:$0xff]
    %v532 = vld [vmem:[#allocation2 + $0x180] sm:$0xff]
    %v533 = vld [vmem:[#allocation2 + $0x1b8] sm:$0xff]
    %v534 = vld [vmem:[#allocation2 + $0x1f0] sm:$0xff]
    %v535 = vld [vmem:[#allocation2 + $0x228] sm:$0xff]
    %v536 = vld [vmem:[#allocation2 + $0x260] sm:$0xff]
    %v537 = vld [vmem:[#allocation2 + $0x298] sm:$0xff]
    %v538 = vld [vmem:[#allocation2 + $0x2d0] sm:$0xff]
    %v539 = vld [vmem:[#allocation2 + $0x308] sm:$0xff]
    %v540 = vld [vmem:[#allocation2 + $0x340] sm:$0xff]
    %v541 = vld [vmem:[#allocation2 + $0x378] sm:$0xff]
    %v542 = vld [vmem:[%s2 + $0x6] sm:$0x1]
    %v544 = vlaneseq
    %v545 = vshrl.u32 %v544, 7
    %v546 = vsub.s32 0, %v545
    %v547 = vrot.slane %v542, %v546
    %549 = vmatprep.subr.mxu0 0.0
    %550 = vmatpush1.msra.mxu0 %v541
    %551 = vmatprep.subr.mxu0 0.0
    %552 = vmatpush1.msra.mxu0 %v540
    %553 = vmatprep.subr.mxu0 0.0
    %554 = vmatpush1.msra.mxu0 %v539
    %555 = vmatprep.subr.mxu0 0.0
    %556 = vmatpush1.msra.mxu0 %v538
    %557 = vmatprep.subr.mxu0 0.0
    %558 = vmatpush1.msra.mxu0 %v537
    %559 = vmatprep.subr.mxu0 0.0
    %560 = vmatpush1.msra.mxu0 %v536
    %561 = vmatprep.subr.mxu0 0.0
    %562 = vmatpush1.msra.mxu0 %v535
    %563 = vmatprep.subr.mxu0 0.0
    %564 = vmatpush1.msra.mxu0 %v534
    %565 = vmatprep.subr.mxu0 0.0
    %566 = vmatpush1.msra.mxu0 %v533
    %567 = vmatprep.subr.mxu0 0.0
    %568 = vmatpush1.msra.mxu0 %v532
    %569 = vmatprep.subr.mxu0 0.0
    %570 = vmatpush1.msra.mxu0 %v531
    %571 = vmatprep.subr.mxu0 0.0
    %572 = vmatpush1.msra.mxu0 %v530
    %573 = vmatprep.subr.mxu0 0.0
    %574 = vmatpush1.msra.mxu0 %v529
    %575 = vmatprep.subr.mxu0 0.0
    %576 = vmatpush1.msra.mxu0 %v528
    %577 = vmatprep.subr.mxu0 0.0
    %578 = vmatpush1.msra.mxu0 %v527
    %579 = vmatprep.subr.mxu0 0.0
    %580 = vmatpush1.msra.mxu0 %v526
    %581 = vmatprep.subr.mxu0 0.0
    %582 = vmatpush2.msra.mxu0 0.0
    %583 = vmatprep.subr.mxu0 0.0
    %584 = vmatpush2.msra.mxu0 0.0
    %585 = vmatprep.subr.mxu0 0.0
    %586 = vmatpush2.msra.mxu0 0.0
    %587 = vmatprep.subr.mxu0 0.0
    %588 = vmatpush2.msra.mxu0 0.0
    %589 = vmatprep.subr.mxu0 0.0
    %590 = vmatpush2.msra.mxu0 0.0
    %591 = vmatprep.subr.mxu0 0.0
    %592 = vmatpush2.msra.mxu0 0.0
    %593 = vmatprep.subr.mxu0 0.0
    %594 = vmatpush2.msra.mxu0 0.0
    %595 = vmatprep.subr.mxu0 0.0
    %596 = vmatpush2.msra.mxu0 0.0
    %597 = vmatprep.subr.mxu0 0.0
    %598 = vmatpush2.msra.mxu0 0.0
    %599 = vmatprep.subr.mxu0 0.0
    %600 = vmatpush2.msra.mxu0 0.0
    %601 = vmatprep.subr.mxu0 0.0
    %602 = vmatpush2.msra.mxu0 0.0
    %603 = vmatprep.subr.mxu0 0.0
    %604 = vmatpush2.msra.mxu0 0.0
    %605 = vmatprep.subr.mxu0 0.0
    %606 = vmatpush2.msra.mxu0 0.0
    %607 = vmatprep.subr.mxu0 0.0
    %608 = vmatpush2.msra.mxu0 0.0
    %609 = vmatprep.subr.mxu0 0.0
    %610 = vmatpush2.msra.mxu0 0.0
    %611 = vmatprep.subr.mxu0 0.0
    %612 = vmatpush2.msra.mxu0 0.0
    %613 = vmatprep.mubr.f32.mxu0 0.0
    %614 = vmatmul.mubr.f32.gmra.mxu0 %v525
    %v615 = vpop.f32.mrf.mxu0
    %v616 = vadd.f32 %v547, %v615
    %v617 = vpop.f32.mrf.mxu0
    %618 = vdwg.mxu0
    %619 = vst [vmem:[%s3] sm:$0xff] %v616
    %620 = vst [vmem:[%s3 + $0x8] sm:$0xff] %v329
    %621 = vst [vmem:[%s3 + $0x10] sm:$0xff] %v331
    // Predicated region
    $region18: #{vae_forward.1} parent=1 // pred_check
      _
    $region19: #{vae_forward.1} parent=1 // pred_check_branch
      %623 = sbr.rel (0) target = $region21
    $region20: #{vae_forward.1} parent=1 // pred_region
      _
    $region21: #{vae_forward.1} parent=1 // pred_fallthru
      _
    // Predicated region
    $region22: #{vae_forward.1} parent=1 // pred_check
      _
    $region23: #{vae_forward.1} parent=1 // pred_check_branch
      %625 = sbr.rel (0) target = $region25
    $region24: #{vae_forward.1} parent=1 // pred_region
      _
    $region25: #{vae_forward.1} parent=1 // pred_fallthru
      _
    %626 = vsyncpa [#allocation3], 1

</llo_original>
